<compile_context>
chip_gen: v5e
topology: v5e:2x2
jax: 0.10.0
libtpu: 0.0.40
codegen_flags: <defaults>
</compile_context>

<pallas_src>
import functools

import jax
import jax.numpy as jnp
from jax import lax
from jax.experimental import pallas as pl
from jax.experimental.pallas import tpu as pltpu


def _vmem_budget_bytes():
    try:
        cap = pltpu.get_tpu_info().vmem_capacity_bytes   # 128 MiB v5e/v6e, 64 MiB v7x
    except Exception:
        cap = 64 * 1024 * 1024
    return int(min(cap * 0.6, 96 * 1024 * 1024))


_VMEM_BUDGET = _vmem_budget_bytes()


def _conv_stats_kernel(p_ref, w_ref, b_ref, y_ref, st_ref, *, btile):
    """3x3 conv as one channel-major MXU matmul per image + per-step BN partials.

    p_ref:  (btile, 9*Cin, H*W)  bf16 im2col patches (built in the XLA wrapper)
    w_ref:  (Cout, 9*Cin)        bf16 conv weight (tap-major, channel-minor K)
    b_ref:  (Cout, 1)            f32 conv bias
    y_ref:  (btile, Cout, H*W)   f32 conv output (lane axis = H*W -> lane-dense)
    st_ref: (1, Cout, 2)         f32 per-step [sum, sum-of-squares]
    """
    w = w_ref[...]
    bias = b_ref[...]
    s_tot = None
    ss_tot = None
    for b in range(btile):  # small static unroll (btile <= 8)
        acc = jnp.dot(w, p_ref[b], preferred_element_type=jnp.float32)  # (Cout, HW)
        acc = acc + bias
        y_ref[b] = acc
        s = jnp.sum(acc, axis=1, keepdims=True)          # (Cout, 1)
        ss = jnp.sum(acc * acc, axis=1, keepdims=True)   # (Cout, 1)
        s_tot = s if s_tot is None else s_tot + s
        ss_tot = ss if ss_tot is None else ss_tot + ss
    st_ref[0] = jnp.concatenate([s_tot, ss_tot], axis=1)  # (Cout, 2)


def _bn_relu_kernel(y_ref, sc_ref, sh_ref, o_ref):
    """y*scale + shift, ReLU.  scale/shift already fold mean/var/gamma/beta."""
    scale = sc_ref[...][None]   # (1, Cout, 1)
    shift = sh_ref[...][None]   # (1, Cout, 1)
    o_ref[...] = jnp.maximum(y_ref[...] * scale + shift, 0.0)


@jax.jit
def decoder_block(x_nchw, w_oihw, bias, gamma, beta):
    """x: (N, Cin, H, W) f32 -> (N, Cout, 2H, 2W) f32 (PyTorch NCHW semantics)."""
    N, Cin, H, W = x_nchw.shape
    Cout = w_oihw.shape[0]
    HW = H * W
    K = 9 * Cin

    # ---- im2col in XLA (small Cin): one lane-dense bf16 slab per image ---------
    xp = jnp.pad(x_nchw.astype(jnp.bfloat16), ((0, 0), (0, 0), (1, 1), (1, 1)))
    taps = [xp[:, :, dh:dh + H, dw:dw + W] for dh in range(3) for dw in range(3)]
    patches = jnp.stack(taps, axis=1).reshape(N, K, HW)          # (N, 9*Cin, H*W)

    # (Cout, Cin, 3, 3) -> (Cout, 3, 3, Cin) -> (Cout, 9*Cin): tap-major K order.
    w2 = jnp.transpose(w_oihw, (0, 2, 3, 1)).reshape(Cout, K).astype(jnp.bfloat16)
    b2 = bias.reshape(Cout, 1).astype(jnp.float32)

    # ---- pick images-per-step so double-buffered tiles fit the VMEM budget -----
    per_img = (K * HW * 2) * 2 + (Cout * HW * 4) * 4  # patches(bf16,2buf) + y/z(f32)
    btile = 1
    for cand in range(min(N, 8), 0, -1):              # cap unroll at 8 images/step
        if N % cand == 0 and cand * per_img <= _VMEM_BUDGET // 2:
            btile = cand
            break
    nblk = N // btile

    cparams = pltpu.CompilerParams(dimension_semantics=("parallel",),
                                   vmem_limit_bytes=_VMEM_BUDGET)

    # ---- phase 1: conv (one MXU matmul per image) + partial BN stats -----------
    y, stats = pl.pallas_call(
        functools.partial(_conv_stats_kernel, btile=btile),
        grid=(nblk,),
        in_specs=[
            pl.BlockSpec((btile, K, HW), lambda n: (n, 0, 0)),
            pl.BlockSpec((Cout, K), lambda n: (0, 0)),
            pl.BlockSpec((Cout, 1), lambda n: (0, 0)),
        ],
        out_specs=(
            pl.BlockSpec((btile, Cout, HW), lambda n: (n, 0, 0)),
            pl.BlockSpec((1, Cout, 2), lambda n: (n, 0, 0)),
        ),
        out_shape=(
            jax.ShapeDtypeStruct((N, Cout, HW), jnp.float32),
            jax.ShapeDtypeStruct((nblk, Cout, 2), jnp.float32),
        ),
        compiler_params=cparams,
    )(patches, w2, b2)

    # ---- finalize BN stats once in XLA (tiny) -----------------------------------
    tot = jnp.sum(stats, axis=0)                      # (Cout, 2)
    inv_count = 1.0 / float(N * HW)
    mean = tot[:, 0:1] * inv_count                    # (Cout, 1)
    var = jnp.maximum(tot[:, 1:2] * inv_count - mean * mean, 0.0)
    scale = gamma.reshape(Cout, 1).astype(jnp.float32) * lax.rsqrt(var + 1e-5)
    shift = beta.reshape(Cout, 1).astype(jnp.float32) - mean * scale

    # ---- phase 2: BN apply + ReLU (lane-dense blocks, megacore-parallel) --------
    z = pl.pallas_call(
        _bn_relu_kernel,
        grid=(nblk,),
        in_specs=[
            pl.BlockSpec((btile, Cout, HW), lambda n: (n, 0, 0)),
            pl.BlockSpec((Cout, 1), lambda n: (0, 0)),
            pl.BlockSpec((Cout, 1), lambda n: (0, 0)),
        ],
        out_specs=pl.BlockSpec((btile, Cout, HW), lambda n: (n, 0, 0)),
        out_shape=jax.ShapeDtypeStruct((N, Cout, HW), jnp.float32),
        compiler_params=cparams,
    )(y, scale, shift)

    # ---- nearest-x2 upsample: pure trailing-dim broadcast, NO transpose ---------
    z4 = z.reshape(N, Cout, H, W)
    up = jnp.broadcast_to(z4[:, :, :, None, :, None], (N, Cout, H, 2, W, 2))
    return up.reshape(N, Cout, 2 * H, 2 * W)


def _reference(x, w, b, gamma, beta):
    """Pure-JAX reference of DecoderBlock_ forward (training-mode BN)."""
    y = lax.conv_general_dilated(
        x, w, window_strides=(1, 1), padding=((1, 1), (1, 1)),
        dimension_numbers=("NCHW", "OIHW", "NCHW"))
    y = y + b.reshape(1, -1, 1, 1)
    mean = jnp.mean(y, axis=(0, 2, 3), keepdims=True)
    var = jnp.mean((y - mean) ** 2, axis=(0, 2, 3), keepdims=True)
    z = gamma.reshape(1, -1, 1, 1) * (y - mean) * lax.rsqrt(var + 1e-5) \
        + beta.reshape(1, -1, 1, 1)
    z = jnp.maximum(z, 0.0)
    N, C, H, W = z.shape
    up = jnp.broadcast_to(z[:, :, :, None, :, None], (N, C, H, 2, W, 2))
    return up.reshape(N, C, 2 * H, 2 * W)


if __name__ == "__main__":
    key = jax.random.PRNGKey(0)
    k1, k2, k3, k4, k5 = jax.random.split(key, 5)

    N, Cin, Cout, H, W = 2, 4, 8, 16, 16
    x = jax.random.normal(k1, (N, Cin, H, W), jnp.float32)
    # Deterministic synthetic parameters (shapes from DecoderBlock_.__init__).
    w = 0.1 * jax.random.normal(k2, (Cout, Cin, 3, 3), jnp.float32)   # Conv2d weight
    b = 0.1 * jax.random.normal(k3, (Cout,), jnp.float32)             # Conv2d bias
    gamma = 1.0 + 0.1 * jax.random.normal(k4, (Cout,), jnp.float32)   # BN weight
    beta = 0.1 * jax.random.normal(k5, (Cout,), jnp.float32)          # BN bias

    out = decoder_block(x, w, b, gamma, beta)
    jax.block_until_ready(out)
    assert out.shape == (N, Cout, 2 * H, 2 * W) and out.dtype == jnp.float32
    assert bool(jnp.all(jnp.isfinite(out)))

    ref = _reference(x, w, b, gamma, beta)
    err = float(jnp.max(jnp.abs(out - ref)))
    assert err < 1e-1, f"max abs err vs reference too large: {err}"
    print("KERNEL_OK")
</pallas_src>

<mosaic_0001>
module attributes {stable_mosaic.version = 11 : i64} {
  func.func @_bn_relu_kernel(%arg0: i32, %arg1: memref<2x8x256xf32, #tpu.memory_space<vmem>>, %arg2: memref<8x1xf32, #tpu.memory_space<vmem>>, %arg3: memref<8x1xf32, #tpu.memory_space<vmem>>, %arg4: memref<2x8x256xf32, #tpu.memory_space<vmem>>) attributes {dimension_semantics = [#tpu.dimension_semantics<parallel>], iteration_bounds = array<i64: 1>, scalar_prefetch = 0 : i64, scratch_operands = 0 : i64, tpu.core_type = #tpu.core_type<tc>, window_params = [{transform_indices = @transform_0, window_bounds = array<i64: 2, 8, 256>}, {pipeline_mode = #tpu.pipeline_mode<synchronous>, transform_indices = @transform_1, window_bounds = array<i64: 8, 1>}, {pipeline_mode = #tpu.pipeline_mode<synchronous>, transform_indices = @transform_2, window_bounds = array<i64: 8, 1>}, {transform_indices = @transform_3, window_bounds = array<i64: 2, 8, 256>}]} {
    %c0 = arith.constant 0 : index
    %c0_0 = arith.constant 0 : index
    %0 = vector.load %arg2[%c0, %c0_0] : memref<8x1xf32, #tpu.memory_space<vmem>>, vector<8x1xf32>
    %1 = vector.shape_cast %0 : vector<8x1xf32> to vector<1x8x1xf32>
    %c0_1 = arith.constant 0 : index
    %c0_2 = arith.constant 0 : index
    %2 = vector.load %arg3[%c0_1, %c0_2] : memref<8x1xf32, #tpu.memory_space<vmem>>, vector<8x1xf32>
    %3 = vector.shape_cast %2 : vector<8x1xf32> to vector<1x8x1xf32>
    %c0_3 = arith.constant 0 : index
    %c0_4 = arith.constant 0 : index
    %c0_5 = arith.constant 0 : index
    %4 = vector.load %arg1[%c0_3, %c0_4, %c0_5] : memref<2x8x256xf32, #tpu.memory_space<vmem>>, vector<2x8x256xf32>
    %5 = vector.broadcast %1 : vector<1x8x1xf32> to vector<2x8x256xf32>
    %6 = arith.mulf %4, %5 : vector<2x8x256xf32>
    %7 = vector.broadcast %3 : vector<1x8x1xf32> to vector<2x8x256xf32>
    %8 = arith.addf %6, %7 : vector<2x8x256xf32>
    %cst = arith.constant 0.000000e+00 : f32
    %9 = vector.broadcast %cst : f32 to vector<2x8x256xf32>
    %10 = arith.maximumf %8, %9 : vector<2x8x256xf32>
    %c0_6 = arith.constant 0 : index
    %c0_7 = arith.constant 0 : index
    %c0_8 = arith.constant 0 : index
    %11 = vector.load %arg4[%c0_6, %c0_7, %c0_8] : memref<2x8x256xf32, #tpu.memory_space<vmem>>, vector<2x8x256xf32>
    tpu.vector_store %arg4[%c0_6, %c0_7, %c0_8], %10 {strides = array<i32>} : memref<2x8x256xf32, #tpu.memory_space<vmem>>, vector<2x8x256xf32>,
    return
  }
  func.func @transform_0(%arg0: i32) -> (i32, i32, i32) {
    %c0_i32 = arith.constant 0 : i32
    %c0_i32_0 = arith.constant 0 : i32
    %c0_i32_1 = arith.constant 0 : i32
    return %arg0, %c0_i32, %c0_i32_0 : i32, i32, i32
  }
  func.func @transform_1(%arg0: i32) -> (i32, i32) {
    %c0_i32 = arith.constant 0 : i32
    %c0_i32_0 = arith.constant 0 : i32
    %c0_i32_1 = arith.constant 0 : i32
    return %c0_i32, %c0_i32_0 : i32, i32
  }
  func.func @transform_2(%arg0: i32) -> (i32, i32) {
    %c0_i32 = arith.constant 0 : i32
    %c0_i32_0 = arith.constant 0 : i32
    %c0_i32_1 = arith.constant 0 : i32
    return %c0_i32, %c0_i32_0 : i32, i32
  }
  func.func @transform_3(%arg0: i32) -> (i32, i32, i32) {
    %c0_i32 = arith.constant 0 : i32
    %c0_i32_0 = arith.constant 0 : i32
    %c0_i32_1 = arith.constant 0 : i32
    return %arg0, %c0_i32, %c0_i32_0 : i32, i32, i32
  }
}

module attributes {stable_mosaic.version = 11 : i64} {
  func.func @_conv_stats_kernel(%arg0: i32, %arg1: memref<2x36x256xbf16, #tpu.memory_space<vmem>>, %arg2: memref<8x36xbf16, #tpu.memory_space<vmem>>, %arg3: memref<8x1xf32, #tpu.memory_space<vmem>>, %arg4: memref<2x8x256xf32, #tpu.memory_space<vmem>>, %arg5: memref<1x8x2xf32, #tpu.memory_space<vmem>>) attributes {dimension_semantics = [#tpu.dimension_semantics<parallel>], iteration_bounds = array<i64: 1>, scalar_prefetch = 0 : i64, scratch_operands = 0 : i64, tpu.core_type = #tpu.core_type<tc>, window_params = [{transform_indices = @transform_0, window_bounds = array<i64: 2, 36, 256>}, {pipeline_mode = #tpu.pipeline_mode<synchronous>, transform_indices = @transform_1, window_bounds = array<i64: 8, 36>}, {pipeline_mode = #tpu.pipeline_mode<synchronous>, transform_indices = @transform_2, window_bounds = array<i64: 8, 1>}, {transform_indices = @transform_3, window_bounds = array<i64: 2, 8, 256>}, {transform_indices = @transform_4, window_bounds = array<i64: 1, 8, 2>}]} {
    %c0 = arith.constant 0 : index
    %c0_0 = arith.constant 0 : index
    %0 = vector.load %arg2[%c0, %c0_0] : memref<8x36xbf16, #tpu.memory_space<vmem>>, vector<8x36xbf16>
    %c0_1 = arith.constant 0 : index
    %c0_2 = arith.constant 0 : index
    %1 = vector.load %arg3[%c0_1, %c0_2] : memref<8x1xf32, #tpu.memory_space<vmem>>, vector<8x1xf32>
    %c0_3 = arith.constant 0 : index
    %c0_4 = arith.constant 0 : index
    %c0_5 = arith.constant 0 : index
    %2 = vector.load %arg1[%c0_3, %c0_4, %c0_5] : memref<2x36x256xbf16, #tpu.memory_space<vmem>>, vector<1x36x256xbf16>
    %3 = vector.shape_cast %2 : vector<1x36x256xbf16> to vector<36x256xbf16>
    %cst = arith.constant dense<0.000000e+00> : vector<8x256xf32>
    %4 = tpu.matmul %0, %3, %cst {dimension_numbers = #tpu.dot_dimension_numbers<[1], [0], [0], [1], [0, 0, 1, 1], [], []>} : vector<8x36xbf16>, vector<36x256xbf16>, vector<8x256xf32> -> vector<8x256xf32>
    %5 = vector.broadcast %1 : vector<8x1xf32> to vector<8x256xf32>
    %6 = arith.addf %4, %5 : vector<8x256xf32>
    %c0_6 = arith.constant 0 : index
    %c0_7 = arith.constant 0 : index
    %c0_8 = arith.constant 0 : index
    %7 = vector.load %arg4[%c0_6, %c0_7, %c0_8] : memref<2x8x256xf32, #tpu.memory_space<vmem>>, vector<1x8x256xf32>
    %8 = vector.shape_cast %7 : vector<1x8x256xf32> to vector<8x256xf32>
    %9 = vector.shape_cast %6 : vector<8x256xf32> to vector<1x8x256xf32>
    tpu.vector_store %arg4[%c0_6, %c0_7, %c0_8], %9 {strides = array<i32>} : memref<2x8x256xf32, #tpu.memory_space<vmem>>, vector<1x8x256xf32>,
    %cst_9 = arith.constant dense<0.000000e+00> : vector<8xf32>
    %10 = vector.multi_reduction <add>, %6, %cst_9 [1] : vector<8x256xf32> to vector<8xf32>
    %11 = vector.shape_cast %10 : vector<8xf32> to vector<8x1xf32>
    %12 = arith.mulf %6, %6 : vector<8x256xf32>
    %cst_10 = arith.constant dense<0.000000e+00> : vector<8xf32>
    %13 = vector.multi_reduction <add>, %12, %cst_10 [1] : vector<8x256xf32> to vector<8xf32>
    %14 = vector.shape_cast %13 : vector<8xf32> to vector<8x1xf32>
    %c1 = arith.constant 1 : index
    %c0_11 = arith.constant 0 : index
    %c0_12 = arith.constant 0 : index
    %15 = vector.load %arg1[%c1, %c0_11, %c0_12] : memref<2x36x256xbf16, #tpu.memory_space<vmem>>, vector<1x36x256xbf16>
    %16 = vector.shape_cast %15 : vector<1x36x256xbf16> to vector<36x256xbf16>
    %cst_13 = arith.constant dense<0.000000e+00> : vector<8x256xf32>
    %17 = tpu.matmul %0, %16, %cst_13 {dimension_numbers = #tpu.dot_dimension_numbers<[1], [0], [0], [1], [0, 0, 1, 1], [], []>} : vector<8x36xbf16>, vector<36x256xbf16>, vector<8x256xf32> -> vector<8x256xf32>
    %18 = vector.broadcast %1 : vector<8x1xf32> to vector<8x256xf32>
    %19 = arith.addf %17, %18 : vector<8x256xf32>
    %c1_14 = arith.constant 1 : index
    %c0_15 = arith.constant 0 : index
    %c0_16 = arith.constant 0 : index
    %20 = vector.load %arg4[%c1_14, %c0_15, %c0_16] : memref<2x8x256xf32, #tpu.memory_space<vmem>>, vector<1x8x256xf32>
    %21 = vector.shape_cast %20 : vector<1x8x256xf32> to vector<8x256xf32>
    %22 = vector.shape_cast %19 : vector<8x256xf32> to vector<1x8x256xf32>
    tpu.vector_store %arg4[%c1_14, %c0_15, %c0_16], %22 {strides = array<i32>} : memref<2x8x256xf32, #tpu.memory_space<vmem>>, vector<1x8x256xf32>,
    %cst_17 = arith.constant dense<0.000000e+00> : vector<8xf32>
    %23 = vector.multi_reduction <add>, %19, %cst_17 [1] : vector<8x256xf32> to vector<8xf32>
    %24 = vector.shape_cast %23 : vector<8xf32> to vector<8x1xf32>
    %25 = arith.mulf %19, %19 : vector<8x256xf32>
    %cst_18 = arith.constant dense<0.000000e+00> : vector<8xf32>
    %26 = vector.multi_reduction <add>, %25, %cst_18 [1] : vector<8x256xf32> to vector<8xf32>
    %27 = vector.shape_cast %26 : vector<8xf32> to vector<8x1xf32>
    %28 = arith.addf %11, %24 : vector<8x1xf32>
    %29 = arith.addf %14, %27 : vector<8x1xf32>
    %30 = tpu.concatenate %28, %29 in 1 : vector<8x1xf32>, vector<8x1xf32> -> vector<8x2xf32>
    %c0_19 = arith.constant 0 : index
    %c0_20 = arith.constant 0 : index
    %c0_21 = arith.constant 0 : index
    %31 = vector.load %arg5[%c0_19, %c0_20, %c0_21] : memref<1x8x2xf32, #tpu.memory_space<vmem>>, vector<1x8x2xf32>
    %32 = vector.shape_cast %31 : vector<1x8x2xf32> to vector<8x2xf32>
    %33 = vector.shape_cast %30 : vector<8x2xf32> to vector<1x8x2xf32>
    tpu.vector_store %arg5[%c0_19, %c0_20, %c0_21], %33 {strides = array<i32>} : memref<1x8x2xf32, #tpu.memory_space<vmem>>, vector<1x8x2xf32>,
    return
  }
  func.func @transform_0(%arg0: i32) -> (i32, i32, i32) {
    %c0_i32 = arith.constant 0 : i32
    %c0_i32_0 = arith.constant 0 : i32
    %c0_i32_1 = arith.constant 0 : i32
    return %arg0, %c0_i32, %c0_i32_0 : i32, i32, i32
  }
  func.func @transform_1(%arg0: i32) -> (i32, i32) {
    %c0_i32 = arith.constant 0 : i32
    %c0_i32_0 = arith.constant 0 : i32
    %c0_i32_1 = arith.constant 0 : i32
    return %c0_i32, %c0_i32_0 : i32, i32
  }
  func.func @transform_2(%arg0: i32) -> (i32, i32) {
    %c0_i32 = arith.constant 0 : i32
    %c0_i32_0 = arith.constant 0 : i32
    %c0_i32_1 = arith.constant 0 : i32
    return %c0_i32, %c0_i32_0 : i32, i32
  }
  func.func @transform_3(%arg0: i32) -> (i32, i32, i32) {
    %c0_i32 = arith.constant 0 : i32
    %c0_i32_0 = arith.constant 0 : i32
    %c0_i32_1 = arith.constant 0 : i32
    return %arg0, %c0_i32, %c0_i32_0 : i32, i32, i32
  }
  func.func @transform_4(%arg0: i32) -> (i32, i32, i32) {
    %c0_i32 = arith.constant 0 : i32
    %c0_i32_0 = arith.constant 0 : i32
    %c0_i32_1 = arith.constant 0 : i32
    return %arg0, %c0_i32, %c0_i32_0 : i32, i32, i32
  }
}

</mosaic_0001>

<llo_original>
// kernel: decoder_block.3
$region0: #{decoder_block.3}
  #allocation0 [shape = 'u32[]', space=smem, size = 0x4, offset = 0x4, fixed_abs, tag = 'smem constant byte address 0x4 - core index']
  #allocation1 [shape = 'u32[72,128]{1,0:T(1,128)}', space=vmem, size = 0x9000, scoped, tag = 'internal scratch']
  %s0 = inlined_call_operand.vmem [shape: f32[2,8,256], index: 0, kind: input, shape index: {}]
  %s1 = inlined_call_operand.vmem [shape: f32[8,1], index: 1, kind: input, shape index: {}]
  %s2 = inlined_call_operand.vmem [shape: f32[8,1], index: 2, kind: input, shape index: {}]
  %s3 = inlined_call_operand.vmem [shape: f32[2,8,256], index: 3, kind: output, shape index: {}]
  %s4 = sld [smem:[#allocation0]]
  $region22: #{decoder_block.3} parent=0
    _
  %s6 = ssub.s32 1, %s4
  %s7 = scalar_select 0, %s6, %s4
  // Predicated region
  $region2: #{decoder_block.3} parent=0 // pred_check
    _
  $region3: #{decoder_block.3} parent=0 // pred_check_branch
    %9 = sbr.rel (0) target = $region5
  $region4: #{decoder_block.3} parent=0 // pred_region
    _
  $region5: #{decoder_block.3} parent=0 // pred_fallthru
    _
  // Predicated region
  $region6: #{decoder_block.3} parent=0 // pred_check
    _
  $region7: #{decoder_block.3} parent=0 // pred_check_branch
    %11 = sbr.rel (0) target = $region9
  $region8: #{decoder_block.3} parent=0 // pred_region
    _
  $region9: #{decoder_block.3} parent=0 // pred_fallthru
    _
  // Predicated region
  $region10: #{decoder_block.3} parent=0 // pred_check
    _
  $region11: #{decoder_block.3} parent=0 // pred_check_branch
    %13 = sbr.rel (0) target = $region13
  $region12: #{decoder_block.3} parent=0 // pred_region
    _
  $region13: #{decoder_block.3} parent=0 // pred_fallthru
    _
  %v14 = vld [vmem:[%s1] sm:$0xff]
  %v15 = vld [vmem:[%s2] sm:$0xff]
  %v16 = vld [vmem:[%s0] sm:$0xff]
  %v17 = vld [vmem:[%s0 + $0x8] sm:$0xff]
  %v18 = vld [vmem:[%s0 + $0x10] sm:$0xff]
  %v19 = vld [vmem:[%s0 + $0x18] sm:$0xff]
  %21 = vset.pattern.permute.xlu0 0
  %22 = vperm.xlu0 %21, %v14
  %v23 = vpop.permute.xlu0 %22
  %v25 = vmul.f32 %v16, %v23
  %v26 = vmul.f32 %v17, %v23
  %v27 = vmul.f32 %v18, %v23
  %v28 = vmul.f32 %v19, %v23
  %30 = vset.pattern.permute.xlu0 0
  %31 = vperm.xlu0 %30, %v15
  %v32 = vpop.permute.xlu0 %31
  %v34 = vadd.f32 %v25, %v32
  %v35 = vadd.f32 %v26, %v32
  %v36 = vadd.f32 %v27, %v32
  %v37 = vadd.f32 %v28, %v32
  %v38 = vmax.f32 %v34, 0.0
  %v39 = vmax.f32 %v35, 0.0
  %v40 = vmax.f32 %v36, 0.0
  %v41 = vmax.f32 %v37, 0.0
  %42 = vst [vmem:[%s3] sm:$0xff] %v38
  %43 = vst [vmem:[%s3 + $0x8] sm:$0xff] %v39
  %44 = vst [vmem:[%s3 + $0x10] sm:$0xff] %v40
  %45 = vst [vmem:[%s3 + $0x18] sm:$0xff] %v41
  // Predicated region
  $region14: #{decoder_block.3} parent=0 // pred_check
    _
  $region15: #{decoder_block.3} parent=0 // pred_check_branch
    %47 = sbr.rel (0) target = $region17
  $region16: #{decoder_block.3} parent=0 // pred_region
    _
  $region17: #{decoder_block.3} parent=0 // pred_fallthru
    _
  // Predicated region
  $region18: #{decoder_block.3} parent=0 // pred_check
    _
  $region19: #{decoder_block.3} parent=0 // pred_check_branch
    %49 = sbr.rel (0) target = $region21
  $region20: #{decoder_block.3} parent=0 // pred_region
    _
  $region21: #{decoder_block.3} parent=0 // pred_fallthru
    _

// kernel: decoder_block.2
$region0: #{decoder_block.2}
  #allocation0 [shape = 'u32[]', space=smem, size = 0x4, offset = 0x4, fixed_abs, tag = 'smem constant byte address 0x4 - core index']
  #allocation1 [shape = 'u32[72,128]{1,0:T(1,128)}', space=vmem, size = 0x9000, scoped, tag = 'internal scratch']
  %s0 = inlined_call_operand.vmem [shape: bf16[2,36,256], index: 0, kind: input, shape index: {}]
  %s1 = inlined_call_operand.vmem [shape: bf16[8,36], index: 1, kind: input, shape index: {}]
  %s2 = inlined_call_operand.vmem [shape: f32[8,1], index: 2, kind: input, shape index: {}]
  %s3 = inlined_call_operand.vmem [shape: f32[2,8,256], index: 3, kind: output, shape index: {0}]
  %s4 = inlined_call_operand.vmem [shape: f32[1,8,2], index: 4, kind: output, shape index: {1}]
  %5 = xla_tuple %s3, %s4
  %s6 = sld [smem:[#allocation0]]
  $region30: #{decoder_block.2} parent=0
    _
  %s8 = ssub.s32 1, %s6
  %s9 = scalar_select 0, %s8, %s6
  // Predicated region
  $region2: #{decoder_block.2} parent=0 // pred_check
    _
  $region3: #{decoder_block.2} parent=0 // pred_check_branch
    %11 = sbr.rel (0) target = $region5
  $region4: #{decoder_block.2} parent=0 // pred_region
    _
  $region5: #{decoder_block.2} parent=0 // pred_fallthru
    _
  // Predicated region
  $region6: #{decoder_block.2} parent=0 // pred_check
    _
  $region7: #{decoder_block.2} parent=0 // pred_check_branch
    %13 = sbr.rel (0) target = $region9
  $region8: #{decoder_block.2} parent=0 // pred_region
    _
  $region9: #{decoder_block.2} parent=0 // pred_fallthru
    _
  // Predicated region
  $region10: #{decoder_block.2} parent=0 // pred_check
    _
  $region11: #{decoder_block.2} parent=0 // pred_check_branch
    %15 = sbr.rel (0) target = $region13
  $region12: #{decoder_block.2} parent=0 // pred_region
    _
  $region13: #{decoder_block.2} parent=0 // pred_fallthru
    _
  %v17 = vld [vmem:[%s1] sm:$0xf]
  %v18 = vld [vmem:[%s2] sm:$0xff]
  %v19 = vld [vmem:[%s0] sm:$0xff]
  %v20 = vld [vmem:[%s0 + $0x8] sm:$0xff]
  %v21 = vld [vmem:[%s0 + $0x10] sm:$0xff]
  %v22 = vld [vmem:[%s0 + $0x18] sm:$0xff]
  %v23 = vld [vmem:[%s0 + $0x20] sm:$0x33]
  %25 = vset.pattern.permute.xlu0 0
  %26 = vperm.xlu0 %25, %v18
  %v27 = vpop.permute.xlu0 %26
  %v34 = vunpack.c.l.b16 %v19
  %v35 = vunpack.c.h.b16 %v19
  %v36 = vunpack.c.l.b16 %v20
  %v37 = vunpack.c.h.b16 %v20
  %v38 = vunpack.c.l.b16 %v21
  %v39 = vunpack.c.h.b16 %v21
  %v40 = vunpack.c.l.b16 %v22
  %v41 = vunpack.c.h.b16 %v22
  %v42 = vunpack.c.l.b16 %v23
  %v43 = vunpack.c.h.b16 %v23
  %v44 = vpack.c.b16 %v36, %v34
  %v45 = vpack.c.b16 %v37, %v35
  %v46 = vpack.c.b16 %v40, %v38
  %v47 = vpack.c.b16 %v41, %v39
  %v48 = vpack.c.b16 %v42, %v42
  %v49 = vpack.c.b16 %v43, %v43
  %vm54 = vcmask 293888
  %v56 = vsel %vm54, %v17, 0
  %vm58 = vcmask 1041408
  %v60 = vsel %vm58, %v48, 0
  %v63 = vsel %vm58, %v49, 0
  %65 = vmatpush.bf16.msra.mxu0 0
  %66 = vmatpush.bf16.msra.mxu0 0
  %67 = vmatpush.bf16.msra.mxu0 0
  %68 = vmatpush.bf16.msra.mxu0 0
  %69 = vmatpush.bf16.msra.mxu0 0
  %70 = vmatpush.bf16.msra.mxu0 %v60
  %71 = vmatpush.bf16.msra.mxu0 %v46
  %72 = vmatpush.bf16.msra.mxu0 %v44
  %73 = vmatmul.bf16.gmra.mxu0 %v56
  %v74 = vpop.f32.mrf.mxu0
  %v75 = vadd.f32 %v27, %v74
  %v76 = vpop.f32.mrf.mxu0
  %77 = vdwg.mxu0
  %78 = vmatpush.bf16.msra.mxu0 0
  %79 = vmatpush.bf16.msra.mxu0 0
  %80 = vmatpush.bf16.msra.mxu0 0
  %81 = vmatpush.bf16.msra.mxu0 0
  %82 = vmatpush.bf16.msra.mxu0 0
  %83 = vmatpush.bf16.msra.mxu0 %v63
  %84 = vmatpush.bf16.msra.mxu0 %v47
  %85 = vmatpush.bf16.msra.mxu0 %v45
  %86 = vmatmul.bf16.gmra.mxu0 %v56
  %v87 = vpop.f32.mrf.mxu0
  %v88 = vadd.f32 %v27, %v87
  %v89 = vpop.f32.mrf.mxu0
  %90 = vdwg.mxu0
  %91 = vst [vmem:[%s3] sm:$0xff] %v75
  %92 = vst [vmem:[%s3 + $0x8] sm:$0xff] %v88
  %v93 = vadd.f32 %v75, %v88
  %94 = vadd.xlane.f32.xlu0 %v93
  %v95 = vpop.xlane.xlu0 %94
  %v96 = vmul.f32 %v75, %v75
  %v97 = vmul.f32 %v88, %v88
  %v98 = vadd.f32 %v96, %v97
  %99 = vadd.xlane.f32.xlu0 %v98
  %v100 = vpop.xlane.xlu0 %99
  %s101 = scalar_lea.vmem %s0, 40
  %v102 = vld [vmem:[%s101] sm:$0xff]
  %v103 = vld [vmem:[%s101 + $0x8] sm:$0xff]
  %v104 = vld [vmem:[%s101 + $0x10] sm:$0xff]
  %v105 = vld [vmem:[%s101 + $0x18] sm:$0xff]
  %v106 = vld [vmem:[%s101 + $0x20] sm:$0x33]
  %v112 = vunpack.c.l.b16 %v102
  %v113 = vunpack.c.h.b16 %v102
  %v114 = vunpack.c.l.b16 %v103
  %v115 = vunpack.c.h.b16 %v103
  %v116 = vunpack.c.l.b16 %v104
  %v117 = vunpack.c.h.b16 %v104
  %v118 = vunpack.c.l.b16 %v105
  %v119 = vunpack.c.h.b16 %v105
  %v120 = vunpack.c.l.b16 %v106
  %v121 = vunpack.c.h.b16 %v106
  %v122 = vpack.c.b16 %v114, %v112
  %v123 = vpack.c.b16 %v115, %v113
  %v124 = vpack.c.b16 %v118, %v116
  %v125 = vpack.c.b16 %v119, %v117
  %v126 = vpack.c.b16 %v120, %v120
  %v127 = vpack.c.b16 %v121, %v121
  %v133 = vsel %vm58, %v126, 0
  %v136 = vsel %vm58, %v127, 0
  %138 = vmatpush.bf16.msra.mxu0 0
  %139 = vmatpush.bf16.msra.mxu0 0
  %140 = vmatpush.bf16.msra.mxu0 0
  %141 = vmatpush.bf16.msra.mxu0 0
  %142 = vmatpush.bf16.msra.mxu0 0
  %143 = vmatpush.bf16.msra.mxu0 %v133
  %144 = vmatpush.bf16.msra.mxu0 %v124
  %145 = vmatpush.bf16.msra.mxu0 %v122
  %146 = vmatmul.bf16.gmra.mxu0 %v56
  %v147 = vpop.f32.mrf.mxu0
  %v148 = vadd.f32 %v27, %v147
  %v149 = vpop.f32.mrf.mxu0
  %150 = vdwg.mxu0
  %151 = vmatpush.bf16.msra.mxu0 0
  %152 = vmatpush.bf16.msra.mxu0 0
  %153 = vmatpush.bf16.msra.mxu0 0
  %154 = vmatpush.bf16.msra.mxu0 0
  %155 = vmatpush.bf16.msra.mxu0 0
  %156 = vmatpush.bf16.msra.mxu0 %v136
  %157 = vmatpush.bf16.msra.mxu0 %v125
  %158 = vmatpush.bf16.msra.mxu0 %v123
  %159 = vmatmul.bf16.gmra.mxu0 %v56
  %v160 = vpop.f32.mrf.mxu0
  %v161 = vadd.f32 %v27, %v160
  %v162 = vpop.f32.mrf.mxu0
  %163 = vdwg.mxu0
  %s164 = scalar_lea.vmem %s3, 16
  %165 = vst [vmem:[%s164] sm:$0xff] %v148
  %166 = vst [vmem:[%s164 + $0x8] sm:$0xff] %v161
  %v167 = vadd.f32 %v148, %v161
  %168 = vadd.xlane.f32.xlu0 %v167
  %v169 = vpop.xlane.xlu0 %168
  %v170 = vmul.f32 %v148, %v148
  %v171 = vmul.f32 %v161, %v161
  %v172 = vadd.f32 %v170, %v171
  %173 = vadd.xlane.f32.xlu0 %v172
  %v174 = vpop.xlane.xlu0 %173
  %v175 = vadd.f32 %v95, %v169
  %v176 = vadd.f32 %v100, %v174
  %vm177 = vcmask 7168
  %v178 = vsel %vm177, %v175, %v176
  %vm179 = vcmask 15360
  %180 = vst.msk [vmem:[%s4] sm:$0xff] %vm179, %v178
  // Predicated region
  $region14: #{decoder_block.2} parent=0 // pred_check
    _
  $region15: #{decoder_block.2} parent=0 // pred_check_branch
    %182 = sbr.rel (0) target = $region17
  $region16: #{decoder_block.2} parent=0 // pred_region
    _
  $region17: #{decoder_block.2} parent=0 // pred_fallthru
    _
  // Predicated region
  $region18: #{decoder_block.2} parent=0 // pred_check
    _
  $region19: #{decoder_block.2} parent=0 // pred_check_branch
    %184 = sbr.rel (0) target = $region21
  $region20: #{decoder_block.2} parent=0 // pred_region
    _
  $region21: #{decoder_block.2} parent=0 // pred_fallthru
    _
  // Predicated region
  $region22: #{decoder_block.2} parent=0 // pred_check
    _
  $region23: #{decoder_block.2} parent=0 // pred_check_branch
    %186 = sbr.rel (0) target = $region25
  $region24: #{decoder_block.2} parent=0 // pred_region
    _
  $region25: #{decoder_block.2} parent=0 // pred_fallthru
    _
  // Predicated region
  $region26: #{decoder_block.2} parent=0 // pred_check
    _
  $region27: #{decoder_block.2} parent=0 // pred_check_branch
    %188 = sbr.rel (0) target = $region29
  $region28: #{decoder_block.2} parent=0 // pred_region
    _
  $region29: #{decoder_block.2} parent=0 // pred_fallthru
    _

</llo_original>
